<compile_context>
chip_gen: v7x
topology: tpu7x:2x2x1
jax: 0.10.0
libtpu: 0.0.40
codegen_flags: <defaults>
</compile_context>

<pallas_src>
import jax
import jax.numpy as jnp
from jax.experimental import pallas as pl
from jax.experimental.pallas import tpu as pltpu


def _round_up(v, m):
    return (v + m - 1) // m * m


def _tpu_vmem_capacity_bytes():
    """Physical per-core VMEM; falls back to 128 MiB (v5e/v6e) if unknown."""
    try:
        info = pltpu.get_tpu_info()
        cap = int(getattr(info, "vmem_capacity_bytes", 0))
        if cap > 0:
            return cap
    except Exception:
        pass
    return 128 << 20


# --------------------------------------------------------------------------
# Phase 1: E = x_RGB @ x_RGB^T, accumulated over lane-dense N-chunks.
#   finalize=True : last chunk writes beta * softmax(rowmax(E)-E) in x.dtype.
#   finalize=False: writes the raw f32 partial Gram (split-reduction path).
# --------------------------------------------------------------------------
def _make_gram_kernel(*, N, lane_chunk, cps, needs_mask, finalize):
    def kernel(beta_ref, xr_ref, out_ref, acc_ref):
        s = pl.program_id(1)
        k = pl.program_id(2)

        @pl.when(k == 0)
        def _():
            acc_ref[...] = jnp.zeros_like(acc_ref)

        xr = xr_ref[...]
        if needs_mask:
            # Ragged (or, for the split path, duplicated/over-covering) chunk:
            # zero lanes past the true spatial extent before accumulating.
            g = s * cps + k
            valid = N - g * lane_chunk
            lane = jax.lax.broadcasted_iota(jnp.int32, xr.shape, 2)
            xr = jnp.where(lane < valid, xr, jnp.zeros_like(xr))

        # NOTE: both MXU operands are the same (C, lane_chunk) chunk; Mosaic
        # should emit a single XLU relayout per step.  If profiling shows two,
        # switch the second operand to an explicit jnp.swapaxes(xr, -1, -2).
        acc_ref[...] += jnp.einsum(
            "bcn,bdn->bcd", xr, xr, preferred_element_type=jnp.float32
        )

        @pl.when(k == cps - 1)
        def _():
            if finalize:
                e = acc_ref[...]
                # softmax(rowmax(E) - E) == exp(rowmin(E) - E) / sum: one row
                # reduction instead of two, numerically identical.  beta is
                # folded in here so phase 2 is a pure matmul + residual.
                p = jnp.exp(jnp.min(e, axis=-1, keepdims=True) - e)
                denom = jnp.sum(p, axis=-1, keepdims=True)
                out_ref[...] = (p * (beta_ref[0] / denom)).astype(out_ref.dtype)
            else:
                out_ref[...] = acc_ref[...]

    return kernel


# --------------------------------------------------------------------------
# Phase 2: out = attention @ x + x  (attention already beta-scaled, x.dtype)
# --------------------------------------------------------------------------
def _apply_kernel(att_ref, x_ref, o_ref):
    # att_ref: (Bt, C, C); x_ref / o_ref: (Bt, C, lane_chunk).  The last chunk
    # may be partial: OOB output lanes are masked on store and the garbage
    # input lanes only feed those dropped columns.
    x = x_ref[...]
    out = jnp.einsum("bcd,bdn->bcn", att_ref[...], x,
                     preferred_element_type=jnp.float32)
    o_ref[...] = (out + x.astype(jnp.float32)).astype(o_ref.dtype)


# --------------------------------------------------------------------------
# Wrapper
# --------------------------------------------------------------------------
def aca_module(x, x_rgb, beta, *, lane_chunk=None, batch_block=None,
               split_reduction=None):
    """Pallas implementation of ACA_Module.forward.

    Args:
      x:     (B, C, H, W) -- 'value' branch (and residual)
      x_rgb: (B, C, H, W) -- branch used to build the CxC channel attention
      beta:  (1,) float32 -- learnable scale
    Returns:
      (B, C, H, W), same dtype as x.
    """
    B, C, H, W = x.shape
    N = H * W
    itemsize = jnp.dtype(x.dtype).itemsize

    vmem_cap = _tpu_vmem_capacity_bytes()
    # v7x-like: ~64 MiB per-TC VMEM, 2 TensorCores/chip, ~3.2 TB/s HBM.
    small_vmem = vmem_cap <= (96 << 20)
    vmem_budget = int(0.75 * vmem_cap)   # headroom for compiler scratch/sems

    # ---- spatial chunk: multiple of 128 lanes; bigger on v7x where the
    # faster HBM makes the ~0.35us per-grid-step overhead relatively costlier.
    if lane_chunk is None:
        target = (4 << 20) if small_vmem else (2 << 20)
        lane_chunk = max(128, (target // max(C * itemsize, 1)) // 128 * 128)
    lane_chunk = int(min(lane_chunk, _round_up(N, 128)))

    # ---- batch block: amortize per-step overhead at small C.  Only keep
    # >= 2 parallel batch steps on the two-TensorCore generation.
    if batch_block is None:
        per_batch_bytes = C * (lane_chunk + C) * itemsize
        budget = max(1, (6 << 20) // max(per_batch_bytes, 1))
        if small_vmem and B > 1:
            cap = min(budget, max(1, B // 2))
        else:
            cap = budget
        batch_block = 1
        for d in range(1, B + 1):
            if B % d == 0 and d <= cap:
                batch_block = d
    Bt = int(batch_block)
    n_batch_blocks = B // Bt

    # ---- keep the double-buffered working set comfortably inside VMEM ------
    # TODO(synk): very large C (Bt*C*C*4 approaching VMEM) would also need the
    # channel axis of the attention tiled; not done here.
    def _working_set(chunk):
        bx = Bt * C * chunk * itemsize
        ba = Bt * C * C * 4
        return 2 * ba + 4 * bx

    while _working_set(lane_chunk) + (8 << 20) > vmem_budget and lane_chunk > 128:
        lane_chunk = max(128, (lane_chunk // 2) // 128 * 128)
    vmem_limit = int(min(max(_working_set(lane_chunk) + (8 << 20), 16 << 20),
                         vmem_budget))

    n_chunks = int(pl.cdiv(N, lane_chunk))

    # ---- phase-1 reduction split: only pays off when the second TensorCore
    # would otherwise idle (single batch block on a 2-TC chip).
    if split_reduction is None:
        split_reduction = small_vmem and n_batch_blocks == 1 and n_chunks >= 2
    split_reduction = bool(split_reduction) and n_chunks >= 2
    n_split = 2 if split_reduction else 1
    cps = int(pl.cdiv(n_chunks, n_split))
    needs_mask = (n_split * cps * lane_chunk) != N

    x_f = x.reshape(B, C, N)
    xr_f = x_rgb.reshape(B, C, N)
    beta = beta.astype(jnp.float32)

    if n_split == 1:
        xr_map = lambda b, s, k: (b, 0, k)
        att_shape = jax.ShapeDtypeStruct((B, C, C), x.dtype)
        att_spec = pl.BlockSpec((Bt, C, C), lambda b, s, k: (b, 0, 0))
    else:
        # Clamp the global chunk index so the DMA stays in-bounds; the mask
        # zeroes the duplicated chunk's contribution (valid <= 0 there).
        xr_map = lambda b, s, k: (b, 0, jnp.minimum(s * cps + k, n_chunks - 1))
        att_shape = jax.ShapeDtypeStruct((B, n_split, C, C), jnp.float32)
        att_spec = pl.BlockSpec((Bt, None, C, C), lambda b, s, k: (b, s, 0, 0))

    gram_kernel = _make_gram_kernel(
        N=N, lane_chunk=lane_chunk, cps=cps,
        needs_mask=needs_mask, finalize=(n_split == 1))

    phase1 = pl.pallas_call(
        gram_kernel,
        out_shape=att_shape,
        grid_spec=pltpu.PrefetchScalarGridSpec(
            num_scalar_prefetch=0,
            grid=(n_batch_blocks, n_split, cps),
            in_specs=[
                pl.BlockSpec(memory_space=pltpu.SMEM),            # beta
                pl.BlockSpec((Bt, C, lane_chunk), xr_map),        # x_RGB chunks
            ],
            out_specs=att_spec,
            scratch_shapes=[pltpu.VMEM((Bt, C, C), jnp.float32)],
        ),
        compiler_params=pltpu.CompilerParams(
            dimension_semantics=("parallel", "parallel", "arbitrary"),
            vmem_limit_bytes=vmem_limit,
        ),
    )(beta, xr_f)

    if n_split == 1:
        attention = phase1                      # already beta-scaled, x.dtype
    else:
        # Tiny (B, C, C) finalize in XLA: sum the two partial Grams, inverted
        # softmax, fold in beta, cast to the value dtype.
        energy = phase1.sum(axis=1)
        energy_new = jnp.max(energy, axis=-1, keepdims=True) - energy
        attention = (beta[0] * jax.nn.softmax(energy_new, axis=-1)).astype(x.dtype)

    out = pl.pallas_call(
        _apply_kernel,
        out_shape=jax.ShapeDtypeStruct((B, C, N), x.dtype),
        grid_spec=pltpu.PrefetchScalarGridSpec(
            num_scalar_prefetch=0,
            grid=(n_batch_blocks, n_chunks),
            in_specs=[
                pl.BlockSpec((Bt, C, C), lambda b, k: (b, 0, 0)),           # attention
                pl.BlockSpec((Bt, C, lane_chunk), lambda b, k: (b, 0, k)),  # x
            ],
            out_specs=pl.BlockSpec((Bt, C, lane_chunk), lambda b, k: (b, 0, k)),
        ),
        compiler_params=pltpu.CompilerParams(
            dimension_semantics=("parallel", "parallel"),
            vmem_limit_bytes=vmem_limit,
        ),
    )(attention, x_f)

    return out.reshape(B, C, H, W)


# --------------------------------------------------------------------------
# Pure-JAX reference (mirrors the PyTorch forward)
# --------------------------------------------------------------------------
def _reference(x, x_rgb, beta):
    B, C, H, W = x.shape
    q = x_rgb.reshape(B, C, -1)
    energy = jnp.einsum("bcn,bdn->bcd", q, q)
    energy_new = jnp.max(energy, axis=-1, keepdims=True) - energy
    attention = jax.nn.softmax(energy_new, axis=-1)
    v = x.reshape(B, C, -1)
    out = jnp.einsum("bcd,bdn->bcn", attention, v).reshape(B, C, H, W)
    return beta[0] * out + x


if __name__ == "__main__":
    key = jax.random.PRNGKey(0)
    k1, k2 = jax.random.split(key)

    # PyTorch inits beta to zeros; use a nonzero value so the attention path
    # is actually exercised.
    beta = jnp.array([0.5], dtype=jnp.float32)

    # Case 1: aligned spatial size (H*W multiple of 128), B > 1.
    B, C, H, W = 2, 4, 16, 16
    x = jax.random.normal(k1, (B, C, H, W), dtype=jnp.float32)
    x_rgb = jax.random.normal(k2, (B, C, H, W), dtype=jnp.float32)
    out = jax.block_until_ready(aca_module(x, x_rgb, beta))
    ref = _reference(x, x_rgb, beta)
    assert out.shape == (B, C, H, W)
    assert jnp.allclose(out, ref, atol=1e-2, rtol=1e-2), "mismatch vs reference"

    # Case 2: ragged spatial size (15*15=225), C not a multiple of 8, B=1 ->
    # exercises the in-kernel ragged-chunk mask and the masked partial edge
    # store (no host-side pad / crop any more).
    k3, k4 = jax.random.split(k2)
    B2, C2, H2, W2 = 1, 6, 15, 15
    x2 = jax.random.normal(k3, (B2, C2, H2, W2), dtype=jnp.float32)
    xr2 = jax.random.normal(k4, (B2, C2, H2, W2), dtype=jnp.float32)
    out2 = jax.block_until_ready(aca_module(x2, xr2, beta))
    ref2 = _reference(x2, xr2, beta)
    assert out2.shape == (B2, C2, H2, W2)
    assert jnp.allclose(out2, ref2, atol=1e-2, rtol=1e-2), "mismatch vs reference (ragged)"

    # Case 3: force the split-reduction phase-1 path (v7x two-TensorCore
    # optimization) with an odd chunk count so the clamped + fully-masked
    # duplicate chunk is exercised on any generation.
    k5, k6 = jax.random.split(k4)
    B3, C3, H3, W3 = 1, 8, 24, 24
    x3 = jax.random.normal(k5, (B3, C3, H3, W3), dtype=jnp.float32)
    xr3 = jax.random.normal(k6, (B3, C3, H3, W3), dtype=jnp.float32)
    out3 = jax.block_until_ready(
        aca_module(x3, xr3, beta, lane_chunk=128, split_reduction=True))
    ref3 = _reference(x3, xr3, beta)
    assert out3.shape == (B3, C3, H3, W3)
    assert jnp.allclose(out3, ref3, atol=1e-2, rtol=1e-2), "mismatch vs reference (split)"

    print("KERNEL_OK")
</pallas_src>

<mosaic_0001>
module attributes {stable_mosaic.version = 11 : i64} {
  func.func @kernel(%arg0: i32, %arg1: i32, %arg2: i32, %arg3: memref<1xf32, #tpu.memory_space<smem>>, %arg4: memref<2x4x256xf32, #tpu.memory_space<vmem>>, %arg5: memref<2x4x4xf32, #tpu.memory_space<vmem>>, %arg6: memref<2x4x4xf32, #tpu.memory_space<vmem>>) attributes {dimension_semantics = [#tpu.dimension_semantics<parallel>, #tpu.dimension_semantics<parallel>, #tpu.dimension_semantics<arbitrary>], iteration_bounds = array<i64: 1, 1, 1>, scalar_prefetch = 0 : i64, scratch_operands = 1 : i64, tpu.core_type = #tpu.core_type<tc>, window_params = [{transform_indices = @transform_0, window_bounds = array<i64: 1>}, {transform_indices = @transform_1, window_bounds = array<i64: 2, 4, 256>}, {transform_indices = @transform_2, window_bounds = array<i64: 2, 4, 4>}]} {
    %c0_i32 = arith.constant 0 : i32
    %0 = arith.cmpi eq, %arg2, %c0_i32 : i32
    %1 = arith.extui %0 : i1 to i32
    %c0_i32_0 = arith.constant 0 : i32
    %2 = arith.cmpi ne, %1, %c0_i32_0 : i32
    scf.if %2 {
      %cst_11 = arith.constant 0.000000e+00 : f32
      %11 = vector.broadcast %cst_11 : f32 to vector<2x4x4xf32>
      %c0_12 = arith.constant 0 : index
      %c0_13 = arith.constant 0 : index
      %c0_14 = arith.constant 0 : index
      %12 = vector.load %arg6[%c0_12, %c0_13, %c0_14] : memref<2x4x4xf32, #tpu.memory_space<vmem>>, vector<2x4x4xf32>
      tpu.vector_store %arg6[%c0_12, %c0_13, %c0_14], %11 {strides = array<i32>} : memref<2x4x4xf32, #tpu.memory_space<vmem>>, vector<2x4x4xf32>,
    } else {
    }
    %c0 = arith.constant 0 : index
    %c0_1 = arith.constant 0 : index
    %c0_2 = arith.constant 0 : index
    %3 = vector.load %arg4[%c0, %c0_1, %c0_2] : memref<2x4x256xf32, #tpu.memory_space<vmem>>, vector<2x4x256xf32>
    %c0_3 = arith.constant 0 : index
    %c0_4 = arith.constant 0 : index
    %c0_5 = arith.constant 0 : index
    %4 = vector.load %arg6[%c0_3, %c0_4, %c0_5] : memref<2x4x4xf32, #tpu.memory_space<vmem>>, vector<2x4x4xf32>
    "tpu.trace_start"() <{level = 10 : i32, message = "bcn,bdn->bcd"}> : () -> ()
    %cst = arith.constant dense<0.000000e+00> : vector<2x4x4xf32>
    %5 = tpu.matmul %3, %3, %cst {dimension_numbers = #tpu.dot_dimension_numbers<[2], [2], [1], [1], [0, 0, 0, 1, 1, 1], [0], [0]>} : vector<2x4x256xf32>, vector<2x4x256xf32>, vector<2x4x4xf32> -> vector<2x4x4xf32>
    "tpu.trace_stop"() : () -> ()
    %6 = arith.addf %4, %5 : vector<2x4x4xf32>
    %c0_6 = arith.constant 0 : index
    %c0_7 = arith.constant 0 : index
    %c0_8 = arith.constant 0 : index
    %7 = vector.load %arg6[%c0_6, %c0_7, %c0_8] : memref<2x4x4xf32, #tpu.memory_space<vmem>>, vector<2x4x4xf32>
    tpu.vector_store %arg6[%c0_6, %c0_7, %c0_8], %6 {strides = array<i32>} : memref<2x4x4xf32, #tpu.memory_space<vmem>>, vector<2x4x4xf32>,
    %c0_i32_9 = arith.constant 0 : i32
    %8 = arith.cmpi eq, %arg2, %c0_i32_9 : i32
    %9 = arith.extui %8 : i1 to i32
    %c0_i32_10 = arith.constant 0 : i32
    %10 = arith.cmpi ne, %9, %c0_i32_10 : i32
    scf.if %10 {
      %c0_11 = arith.constant 0 : index
      %c0_12 = arith.constant 0 : index
      %c0_13 = arith.constant 0 : index
      %11 = vector.load %arg6[%c0_11, %c0_12, %c0_13] : memref<2x4x4xf32, #tpu.memory_space<vmem>>, vector<2x4x4xf32>
      %cst_14 = arith.constant dense<0x7F800000> : vector<2x4xf32>
      %12 = vector.multi_reduction <minimumf>, %11, %cst_14 [2] : vector<2x4x4xf32> to vector<2x4xf32>
      %13 = vector.shape_cast %12 : vector<2x4xf32> to vector<2x4x1xf32>
      %14 = vector.broadcast %13 : vector<2x4x1xf32> to vector<2x4x4xf32>
      %15 = arith.subf %14, %11 : vector<2x4x4xf32>
      %16 = math.exp %15 : vector<2x4x4xf32>
      %cst_15 = arith.constant dense<0.000000e+00> : vector<2x4xf32>
      %17 = vector.multi_reduction <add>, %16, %cst_15 [2] : vector<2x4x4xf32> to vector<2x4xf32>
      %18 = vector.shape_cast %17 : vector<2x4xf32> to vector<2x4x1xf32>
      %c0_16 = arith.constant 0 : index
      %19 = memref.load %arg3[%c0_16] : memref<1xf32, #tpu.memory_space<smem>>
      %20 = vector.broadcast %19 : f32 to vector<2x4x1xf32>
      %21 = arith.divf %20, %18 : vector<2x4x1xf32>
      %22 = vector.broadcast %21 : vector<2x4x1xf32> to vector<2x4x4xf32>
      %23 = arith.mulf %16, %22 : vector<2x4x4xf32>
      %c0_17 = arith.constant 0 : index
      %c0_18 = arith.constant 0 : index
      %c0_19 = arith.constant 0 : index
      %24 = vector.load %arg5[%c0_17, %c0_18, %c0_19] : memref<2x4x4xf32, #tpu.memory_space<vmem>>, vector<2x4x4xf32>
      tpu.vector_store %arg5[%c0_17, %c0_18, %c0_19], %23 {strides = array<i32>} : memref<2x4x4xf32, #tpu.memory_space<vmem>>, vector<2x4x4xf32>,
    } else {
    }
    return
  }
  func.func @transform_0(%arg0: i32, %arg1: i32, %arg2: i32) -> i32 {
    %c0_i32 = arith.constant 0 : i32
    %c0_i32_0 = arith.constant 0 : i32
    return %c0_i32 : i32
  }
  func.func @transform_1(%arg0: i32, %arg1: i32, %arg2: i32) -> (i32, i32, i32) {
    %c0_i32 = arith.constant 0 : i32
    %c0_i32_0 = arith.constant 0 : i32
    return %arg0, %c0_i32, %arg2 : i32, i32, i32
  }
  func.func @transform_2(%arg0: i32, %arg1: i32, %arg2: i32) -> (i32, i32, i32) {
    %c0_i32 = arith.constant 0 : i32
    %c0_i32_0 = arith.constant 0 : i32
    %c0_i32_1 = arith.constant 0 : i32
    return %arg0, %c0_i32, %c0_i32_0 : i32, i32, i32
  }
}

</mosaic_0001>

<llo_original>
// kernel: tpu_custom_call.1
$region0: #{tpu_custom_call.1}
  #allocation0 [shape = 'u32[]', space=smem, size = 0x4, offset = 0x4, fixed_abs, tag = 'smem constant byte address 0x4 - core index']
  #allocation1 [shape = 'u32[144,128]{1,0:T(1,128)}', space=vmem, size = 0x12000, scoped, tag = 'internal scratch']
  #allocation2 [shape = 'f32[2,4,4]{2,1,0:T(4,128)}', space=vmem, size = 0x1000, scoped, tag = 'scratch operand']
  #allocation3 [shape = 'f32[1]{0:T(128)S(6)}', space=smem, size = 0x200, scoped, tag = 'scoped memory for tpu_custom_call.1']
  %s0 = inlined_call_operand.<no memory space> [shape: f32[1], index: 0, kind: input, shape index: {}]
  %s1 = inlined_call_operand.hbm [shape: f32[2,4,256], index: 1, kind: input, shape index: {}]
  %s2 = inlined_call_operand.hbm [shape: f32[2,4,4], index: 2, kind: output, shape index: {}]
  %s3 = sld [smem:[#allocation0]]
  $region30: #{tpu_custom_call.1} parent=0
    _
  %s5 = ssub.s32 1, %s3
  %s6 = scalar_select 0, %s5, %s3
  %7 = sst [smem:[#allocation3]] %s0
  $region1: #{tpu_custom_call.1} parent=0
    #allocation4 [shape = 'u8[8192]{0}', space=vmem, size = 0x2000, scoped, tag = 'input window, operand 1, single buffered']
    #allocation5 [shape = 's32[1]{0}', space=sflag, size = 0x4, scoped, tag = 'scoped memory for tpu_custom_call.1']
    #allocation6 [shape = 's32[1]{0}', space=sflag, size = 0x4, scoped, tag = 'scoped memory for tpu_custom_call.1']
    #allocation7 [shape = 'u8[4096]{0}', space=vmem, size = 0x1000, scoped, tag = 'output window, operand 0, single buffered']
    %8 = vsyncpa [#allocation5], 0
    %9 = vsyncpa [#allocation6], 0
    // Predicated region
    $region2: #{tpu_custom_call.1} parent=1 // pred_check
      _
    $region3: #{tpu_custom_call.1} parent=1 // pred_check_branch
      %11 = sbr.rel (0) target = $region5
    $region4: #{tpu_custom_call.1} parent=1 // pred_region
      _
    $region5: #{tpu_custom_call.1} parent=1 // pred_fallthru
      _
    // Predicated region
    $region6: #{tpu_custom_call.1} parent=1 // pred_check
      _
    $region7: #{tpu_custom_call.1} parent=1 // pred_check_branch
      %13 = sbr.rel (0) target = $region9
    $region8: #{tpu_custom_call.1} parent=1 // pred_region
      %s15 = ssub.s32 256, 256
      %16 = vsyncadd [#allocation5], %s15
      %s17 = sshll.u32 [#allocation4], 4
      %s18 = int_to_ptr.vmem [resolvable:$true] %s17
      %23 = dma.hbm_to_vmem [thread:$0]  %s1, 256, %s18, [#allocation5], 128, 128, 8
    $region9: #{tpu_custom_call.1} parent=1 // pred_fallthru
      _
    // Predicated region
    $region10: #{tpu_custom_call.1} parent=1 // pred_check
      _
    $region11: #{tpu_custom_call.1} parent=1 // pred_check_branch
      %25 = sbr.rel (0) target = $region13
    $region12: #{tpu_custom_call.1} parent=1 // pred_region
      %26 = dma.done [#allocation5], 256
    $region13: #{tpu_custom_call.1} parent=1 // pred_fallthru
      _
    %p27 = scmp.eq.s32.totalorder 0, 0
    // Predicated region
    $region14: #{tpu_custom_call.1} parent=1 // pred_check
      %p28 = pneg %p27
    $region15: #{tpu_custom_call.1} parent=1 // pred_check_branch
      %30 = sbr.rel (%p28) target = $region17
    $region16: #{tpu_custom_call.1} parent=1 // pred_region
      %vm31 = vcmask 27648
      %32 = vst.msk [vmem:[#allocation2] sm:$0xf] %vm31, 0.0
      %33 = vst.msk [vmem:[#allocation2 + $0x4] sm:$0xf] %vm31, 0.0
    $region17: #{tpu_custom_call.1} parent=1 // pred_fallthru
      _
    %v34 = vld [vmem:[#allocation4] sm:$0xff]
    %v35 = vld [vmem:[#allocation4 + $0x8] sm:$0xff]
    %v36 = vld [vmem:[#allocation2] sm:$0xf]
    %v37 = vld [vmem:[#allocation2 + $0x4] sm:$0xf]
    %v39 = vcombine.high %v34, %v34
    %41 = vmatprep.subr.mxu0 %v39
    %42 = vmatpush1.xpose.msra.mxu0 %v34
    %43 = vmatprep.subr.mxu0 0.0
    %44 = vmatpush1.xpose.msra.mxu0 0.0
    %45 = vmatprep.subr.mxu0 0.0
    %46 = vmatpush1.xpose.msra.mxu0 0.0
    %47 = vmatprep.subr.mxu0 0.0
    %48 = vmatpush1.xpose.msra.mxu0 0.0
    %49 = vmatprep.subr.mxu0 0.0
    %50 = vmatpush1.xpose.msra.mxu0 0.0
    %51 = vmatprep.subr.mxu0 0.0
    %52 = vmatpush1.xpose.msra.mxu0 0.0
    %53 = vmatprep.subr.mxu0 0.0
    %54 = vmatpush1.xpose.msra.mxu0 0.0
    %55 = vmatprep.subr.mxu0 0.0
    %56 = vmatpush1.xpose.msra.mxu0 0.0
    %57 = vmatprep.subr.mxu0 0.0
    %58 = vmatpush1.xpose.msra.mxu0 0.0
    %59 = vmatprep.subr.mxu0 0.0
    %60 = vmatpush1.xpose.msra.mxu0 0.0
    %61 = vmatprep.subr.mxu0 0.0
    %62 = vmatpush1.xpose.msra.mxu0 0.0
    %63 = vmatprep.subr.mxu0 0.0
    %64 = vmatpush1.xpose.msra.mxu0 0.0
    %65 = vmatprep.subr.mxu0 0.0
    %66 = vmatpush1.xpose.msra.mxu0 0.0
    %67 = vmatprep.subr.mxu0 0.0
    %68 = vmatpush1.xpose.msra.mxu0 0.0
    %69 = vmatprep.subr.mxu0 0.0
    %70 = vmatpush1.xpose.msra.mxu0 0.0
    %71 = vmatprep.subr.mxu0 0.0
    %72 = vmatpush1.xpose.msra.mxu0 0.0
    %73 = vmatprep.subr.mxu0 0.0
    %74 = vmatpush1.xpose.msra.mxu0 0.0
    %75 = vmatprep.subr.mxu0 0.0
    %76 = vmatpush1.xpose.msra.mxu0 0.0
    %77 = vmatprep.subr.mxu0 0.0
    %78 = vmatpush1.xpose.msra.mxu0 0.0
    %79 = vmatprep.subr.mxu0 0.0
    %80 = vmatpush1.xpose.msra.mxu0 0.0
    %81 = vmatprep.subr.mxu0 0.0
    %82 = vmatpush1.xpose.msra.mxu0 0.0
    %83 = vmatprep.subr.mxu0 0.0
    %84 = vmatpush1.xpose.msra.mxu0 0.0
    %85 = vmatprep.subr.mxu0 0.0
    %86 = vmatpush1.xpose.msra.mxu0 0.0
    %87 = vmatprep.subr.mxu0 0.0
    %88 = vmatpush1.xpose.msra.mxu0 0.0
    %89 = vmatprep.subr.mxu0 0.0
    %90 = vmatpush1.xpose.msra.mxu0 0.0
    %91 = vmatprep.subr.mxu0 0.0
    %92 = vmatpush1.xpose.msra.mxu0 0.0
    %93 = vmatprep.subr.mxu0 0.0
    %94 = vmatpush1.xpose.msra.mxu0 0.0
    %95 = vmatprep.subr.mxu0 0.0
    %96 = vmatpush1.xpose.msra.mxu0 0.0
    %97 = vmatprep.subr.mxu0 0.0
    %98 = vmatpush1.xpose.msra.mxu0 0.0
    %99 = vmatprep.subr.mxu0 0.0
    %100 = vmatpush1.xpose.msra.mxu0 0.0
    %101 = vmatprep.subr.mxu0 0.0
    %102 = vmatpush1.xpose.msra.mxu0 0.0
    %103 = vmatprep.subr.mxu0 0.0
    %104 = vmatpush1.xpose.msra.mxu0 0.0
    %105 = vmatprep.mubr.f32.mxu0 %v39
    %106 = vmatmul.mubr.f32.gmra.mrb[0].mxu0 %v34
    %v107 = vpop.f32.mrb[0].mxu0
    %v108 = vadd.f32 0.0, %v107
    %v109 = vpop.f32.mrb[0].mxu0
    %110 = vdwg.mxu0
    %v112 = vcombine.high %v35, %v35
    %114 = vmatprep.subr.mxu0 %v112
    %115 = vmatpush1.xpose.msra.mxu0 %v35
    %116 = vmatprep.subr.mxu0 0.0
    %117 = vmatpush1.xpose.msra.mxu0 0.0
    %118 = vmatprep.subr.mxu0 0.0
    %119 = vmatpush1.xpose.msra.mxu0 0.0
    %120 = vmatprep.subr.mxu0 0.0
    %121 = vmatpush1.xpose.msra.mxu0 0.0
    %122 = vmatprep.subr.mxu0 0.0
    %123 = vmatpush1.xpose.msra.mxu0 0.0
    %124 = vmatprep.subr.mxu0 0.0
    %125 = vmatpush1.xpose.msra.mxu0 0.0
    %126 = vmatprep.subr.mxu0 0.0
    %127 = vmatpush1.xpose.msra.mxu0 0.0
    %128 = vmatprep.subr.mxu0 0.0
    %129 = vmatpush1.xpose.msra.mxu0 0.0
    %130 = vmatprep.subr.mxu0 0.0
    %131 = vmatpush1.xpose.msra.mxu0 0.0
    %132 = vmatprep.subr.mxu0 0.0
    %133 = vmatpush1.xpose.msra.mxu0 0.0
    %134 = vmatprep.subr.mxu0 0.0
    %135 = vmatpush1.xpose.msra.mxu0 0.0
    %136 = vmatprep.subr.mxu0 0.0
    %137 = vmatpush1.xpose.msra.mxu0 0.0
    %138 = vmatprep.subr.mxu0 0.0
    %139 = vmatpush1.xpose.msra.mxu0 0.0
    %140 = vmatprep.subr.mxu0 0.0
    %141 = vmatpush1.xpose.msra.mxu0 0.0
    %142 = vmatprep.subr.mxu0 0.0
    %143 = vmatpush1.xpose.msra.mxu0 0.0
    %144 = vmatprep.subr.mxu0 0.0
    %145 = vmatpush1.xpose.msra.mxu0 0.0
    %146 = vmatprep.subr.mxu0 0.0
    %147 = vmatpush1.xpose.msra.mxu0 0.0
    %148 = vmatprep.subr.mxu0 0.0
    %149 = vmatpush1.xpose.msra.mxu0 0.0
    %150 = vmatprep.subr.mxu0 0.0
    %151 = vmatpush1.xpose.msra.mxu0 0.0
    %152 = vmatprep.subr.mxu0 0.0
    %153 = vmatpush1.xpose.msra.mxu0 0.0
    %154 = vmatprep.subr.mxu0 0.0
    %155 = vmatpush1.xpose.msra.mxu0 0.0
    %156 = vmatprep.subr.mxu0 0.0
    %157 = vmatpush1.xpose.msra.mxu0 0.0
    %158 = vmatprep.subr.mxu0 0.0
    %159 = vmatpush1.xpose.msra.mxu0 0.0
    %160 = vmatprep.subr.mxu0 0.0
    %161 = vmatpush1.xpose.msra.mxu0 0.0
    %162 = vmatprep.subr.mxu0 0.0
    %163 = vmatpush1.xpose.msra.mxu0 0.0
    %164 = vmatprep.subr.mxu0 0.0
    %165 = vmatpush1.xpose.msra.mxu0 0.0
    %166 = vmatprep.subr.mxu0 0.0
    %167 = vmatpush1.xpose.msra.mxu0 0.0
    %168 = vmatprep.subr.mxu0 0.0
    %169 = vmatpush1.xpose.msra.mxu0 0.0
    %170 = vmatprep.subr.mxu0 0.0
    %171 = vmatpush1.xpose.msra.mxu0 0.0
    %172 = vmatprep.subr.mxu0 0.0
    %173 = vmatpush1.xpose.msra.mxu0 0.0
    %174 = vmatprep.subr.mxu0 0.0
    %175 = vmatpush1.xpose.msra.mxu0 0.0
    %176 = vmatprep.subr.mxu0 0.0
    %177 = vmatpush1.xpose.msra.mxu0 0.0
    %178 = vmatprep.mubr.f32.mxu0 %v112
    %179 = vmatmul.mubr.f32.gmra.mrb[0].mxu0 %v35
    %v180 = vpop.f32.mrb[0].mxu0
    %v181 = vadd.f32 0.0, %v180
    %v182 = vpop.f32.mrb[0].mxu0
    %183 = vdwg.mxu0
    %v184 = vadd.f32 %v36, %v108
    %v185 = vadd.f32 %v37, %v181
    %vm186 = vcmask 27648
    %187 = vst.msk [vmem:[#allocation2] sm:$0xf] %vm186, %v184
    %188 = vst.msk [vmem:[#allocation2 + $0x4] sm:$0xf] %vm186, %v185
    // Predicated region
    $region18: #{tpu_custom_call.1} parent=1 // pred_check
      %p189 = pneg %p27
    $region19: #{tpu_custom_call.1} parent=1 // pred_check_branch
      %191 = sbr.rel (%p189) target = $region21
    $region20: #{tpu_custom_call.1} parent=1 // pred_region
      %v192 = vld [vmem:[#allocation2] sm:$0xf]
      %v193 = vld [vmem:[#allocation2 + $0x4] sm:$0xf]
      %v194 = vsel %vm186, %v192, inf
      %195 = vmin.xlane.f32.xlu0 %v194
      %v196 = vpop.xlane.xlu0 %195
      %v197 = vsel %vm186, %v193, inf
      %198 = vmin.xlane.f32.xlu0 %v197
      %v199 = vpop.xlane.xlu0 %198
      %v200 = vsub.f32 %v196, %v192
      %v201 = vsub.f32 %v199, %v193
      %v202 = vmul.f32 %v200, 1.442695
      %v203 = vpow.pop %v202
      %v204 = vmul.f32 %v201, 1.442695
      %v205 = vpow.pop %v204
      %v206 = vsel %vm186, %v203, 0.0
      %207 = vadd.xlane.f32.xlu0 %v206
      %v208 = vpop.xlane.xlu0 %207
      %v209 = vsel %vm186, %v205, 0.0
      %210 = vadd.xlane.f32.xlu0 %v209
      %v211 = vpop.xlane.xlu0 %210
      %s212 = sld [smem:[#allocation3]]
      %v213 = vstv %s212
      %v214 = vrcp.pop %v208
      %v215 = vmul.f32 %v213, %v214
      %v216 = vrcp.pop %v211
      %v217 = vmul.f32 %v213, %v216
      %v218 = vmul.f32 %v203, %v215
      %v219 = vmul.f32 %v205, %v217
      %220 = vst.msk [vmem:[#allocation7] sm:$0xf] %vm186, %v218
      %221 = vst.msk [vmem:[#allocation7 + $0x4] sm:$0xf] %vm186, %v219
    $region21: #{tpu_custom_call.1} parent=1 // pred_fallthru
      _
    // Predicated region
    $region22: #{tpu_custom_call.1} parent=1 // pred_check
      _
    $region23: #{tpu_custom_call.1} parent=1 // pred_check_branch
      %223 = sbr.rel (0) target = $region25
    $region24: #{tpu_custom_call.1} parent=1 // pred_region
      %s225 = ssub.s32 128, 128
      %226 = vsyncadd [#allocation6], %s225
      %s227 = sshll.u32 [#allocation7], 4
      %s228 = int_to_ptr.vmem [resolvable:$true] %s227
      %233 = dma.vmem_to_hbm [thread:$0]  %s228, 128, %s2, [#allocation6], 64, 64, 4
    $region25: #{tpu_custom_call.1} parent=1 // pred_fallthru
      _
    // Predicated region
    $region26: #{tpu_custom_call.1} parent=1 // pred_check
      _
    $region27: #{tpu_custom_call.1} parent=1 // pred_check_branch
      %235 = sbr.rel (0) target = $region29
    $region28: #{tpu_custom_call.1} parent=1 // pred_region
      %236 = dma.done [#allocation6], 128
    $region29: #{tpu_custom_call.1} parent=1 // pred_fallthru
      _
    %237 = vsyncpa [#allocation5], 1
    %238 = vsyncpa [#allocation6], 1

</llo_original>
